<compile_context>
chip_gen: v5e
topology: v5e:2x2
jax: 0.10.0
libtpu: 0.0.40
codegen_flags: <defaults>
</compile_context>

<pallas_src>
import jax
import jax.numpy as jnp
import numpy as np
from jax.experimental import pallas as pl
from jax.experimental.pallas import tpu as pltpu  # noqa: F401  (VMEM defaults used)


def shuffle_n_learn_kernel(x_ref, w1_ref, b1_ref, wf_ref, bc_ref, out_ref):
    """Single-step kernel.

    x_ref : (B, F, D)   flattened frames, natural (batch, frame) layout
    w1_ref: (D, Hd)     encoder layer-1 weight
    b1_ref: (1, Hd)     encoder layer-1 bias
    wf_ref: (F, Hd, 2)  folded classifier weight  W2 @ Wc_f  per frame
    bc_ref: (1, 2)      folded classifier bias    bc + sum_f b2 @ Wc_f
    out_ref:(B, 2)      logits
    """
    num_frames = x_ref.shape[1]
    w1 = w1_ref[...]
    b1 = b1_ref[...]

    # Start the accumulator at the folded bias; everything stays in registers
    # and out_ref is written exactly once (no scratch, no pl.when).
    acc = jnp.broadcast_to(bc_ref[...], out_ref.shape)

    for f in range(num_frames):                       # static unrolled, F=3
        x_f = x_ref[:, f, :]                          # (B, D)
        h = jnp.dot(x_f, w1, preferred_element_type=jnp.float32) + b1
        h = jnp.maximum(h, 0.0)                       # f32 ReLU (VPU)
        acc = acc + jnp.dot(h, wf_ref[f], preferred_element_type=jnp.float32)

    out_ref[...] = acc


def shuffle_n_learn_forward(xs, params, *, matmul_dtype=None):
    """xs: (B, F, C, H, W) float32. Returns logits (B, 2)."""
    B, F, C, H, W = xs.shape
    D = C * H * W
    w1, b1, w2, b2, wc, bc = params
    Hd = w1.shape[1]
    E = w2.shape[1]

    # Free contiguous reshape (no transpose, no extra HBM round trip).
    xs3 = xs.reshape(B, F, D)                                   # (B, F, D)

    # Fold encoder layer 2 into the classifier (embeddings are not outputs).
    wc_f = wc.reshape(F, E, 2)                                  # (F, E, 2)
    wfold = jnp.einsum('he,fec->fhc', w2, wc_f)                 # (F, Hd, 2)
    bc_fold = (bc + jnp.einsum('e,fec->c', b2, wc_f)).reshape(1, 2)
    b1_2d = b1.reshape(1, Hd)

    if matmul_dtype is not None:
        # bf16 MXU inputs (v6e/v7x win at realistic frame sizes); keep f32
        # accumulation and f32 elementwise work.
        xs3 = xs3.astype(matmul_dtype)
        w1 = w1.astype(matmul_dtype)

    # No grid: the whole problem (~300 KB of weights + 24 KB of activations)
    # fits comfortably in VMEM, so every operand gets a full-array VMEM block
    # and the kernel runs in a single step.
    return pl.pallas_call(
        shuffle_n_learn_kernel,
        out_shape=jax.ShapeDtypeStruct((B, 2), jnp.float32),
    )(xs3, w1, b1_2d, wfold, bc_fold)


def reference_forward(xs, params):
    """Pure-JAX reference with the original (un-folded) module semantics."""
    B, F = xs.shape[0], xs.shape[1]
    w1, b1, w2, b2, wc, bc = params
    feats = []
    for i in range(F):
        x = xs[:, i].reshape(B, -1)
        h = jnp.maximum(x @ w1 + b1, 0.0)
        feats.append(h @ w2 + b2)
    f = jnp.concatenate(feats, axis=1)          # (B, F*E)
    return f @ wc + bc                          # (B, 2)


def init_params(key, D, Hd, E, F):
    k1, k2, k3, k4, k5, k6 = jax.random.split(key, 6)
    w1 = jax.random.normal(k1, (D, Hd), jnp.float32) * 0.02
    b1 = jax.random.normal(k2, (Hd,), jnp.float32) * 0.01
    w2 = jax.random.normal(k3, (Hd, E), jnp.float32) * 0.02
    b2 = jax.random.normal(k4, (E,), jnp.float32) * 0.01
    wc = jax.random.normal(k5, (F * E, 2), jnp.float32) * 0.02
    bc = jax.random.normal(k6, (2,), jnp.float32) * 0.01
    return (w1, b1, w2, b2, wc, bc)


if __name__ == "__main__":
    # Small shapes consistent with the module: num_frames=3, embed_len=32,
    # NCHW frames (B=2, C=4, H=16, W=16).
    B, F, C, H, W = 2, 3, 4, 16, 16
    D = C * H * W     # 1024
    Hd = 64           # encoder hidden width
    E = 32            # embed_len

    key = jax.random.PRNGKey(0)
    kx, kp = jax.random.split(key)
    xs = jax.random.normal(kx, (B, F, C, H, W), jnp.float32)
    params = init_params(kp, D, Hd, E, F)

    out = shuffle_n_learn_forward(xs, params)
    out = jax.block_until_ready(out)

    ref = reference_forward(xs, params)
    assert out.shape == (B, 2)
    np.testing.assert_allclose(np.asarray(out), np.asarray(ref),
                               rtol=5e-4, atol=1e-5)
    print("KERNEL_OK")
</pallas_src>

<mosaic_0001>
module attributes {stable_mosaic.version = 11 : i64} {
  func.func @shuffle_n_learn_kernel(%arg0: memref<2x3x1024xf32, #tpu.memory_space<vmem>>, %arg1: memref<1024x64xf32, #tpu.memory_space<vmem>>, %arg2: memref<1x64xf32, #tpu.memory_space<vmem>>, %arg3: memref<3x64x2xf32, #tpu.memory_space<vmem>>, %arg4: memref<1x2xf32, #tpu.memory_space<vmem>>, %arg5: memref<2x2xf32, #tpu.memory_space<vmem>>) attributes {dimension_semantics = [], scalar_prefetch = 0 : i64, scratch_operands = 0 : i64, tpu.core_type = #tpu.core_type<tc>} {
    %c0 = arith.constant 0 : index
    %c0_0 = arith.constant 0 : index
    %0 = vector.load %arg1[%c0, %c0_0] : memref<1024x64xf32, #tpu.memory_space<vmem>>, vector<1024x64xf32>
    %c0_1 = arith.constant 0 : index
    %c0_2 = arith.constant 0 : index
    %1 = vector.load %arg2[%c0_1, %c0_2] : memref<1x64xf32, #tpu.memory_space<vmem>>, vector<1x64xf32>
    %c0_3 = arith.constant 0 : index
    %c0_4 = arith.constant 0 : index
    %2 = vector.load %arg4[%c0_3, %c0_4] : memref<1x2xf32, #tpu.memory_space<vmem>>, vector<1x2xf32>
    %3 = vector.shape_cast %2 : vector<1x2xf32> to vector<1x2xf32>
    %4 = vector.broadcast %3 : vector<1x2xf32> to vector<2x2xf32>
    %c0_5 = arith.constant 0 : index
    %c0_6 = arith.constant 0 : index
    %c0_7 = arith.constant 0 : index
    %5 = vector.load %arg0[%c0_5, %c0_6, %c0_7] : memref<2x3x1024xf32, #tpu.memory_space<vmem>>, vector<2x1x1024xf32>
    %6 = vector.shape_cast %5 : vector<2x1x1024xf32> to vector<2x1024xf32>
    %cst = arith.constant dense<0.000000e+00> : vector<2x64xf32>
    %7 = tpu.matmul %6, %0, %cst {dimension_numbers = #tpu.dot_dimension_numbers<[1], [0], [0], [1], [0, 0, 1, 1], [], []>} : vector<2x1024xf32>, vector<1024x64xf32>, vector<2x64xf32> -> vector<2x64xf32>
    %8 = vector.broadcast %1 : vector<1x64xf32> to vector<2x64xf32>
    %9 = arith.addf %7, %8 : vector<2x64xf32>
    %cst_8 = arith.constant 0.000000e+00 : f32
    %10 = vector.broadcast %cst_8 : f32 to vector<2x64xf32>
    %11 = arith.maximumf %9, %10 : vector<2x64xf32>
    %c0_9 = arith.constant 0 : index
    %c0_10 = arith.constant 0 : index
    %c0_11 = arith.constant 0 : index
    %12 = vector.load %arg3[%c0_9, %c0_10, %c0_11] : memref<3x64x2xf32, #tpu.memory_space<vmem>>, vector<1x64x2xf32>
    %13 = vector.shape_cast %12 : vector<1x64x2xf32> to vector<64x2xf32>
    %cst_12 = arith.constant dense<0.000000e+00> : vector<2x2xf32>
    %14 = tpu.matmul %11, %13, %cst_12 {dimension_numbers = #tpu.dot_dimension_numbers<[1], [0], [0], [1], [0, 0, 1, 1], [], []>} : vector<2x64xf32>, vector<64x2xf32>, vector<2x2xf32> -> vector<2x2xf32>
    %15 = arith.addf %4, %14 : vector<2x2xf32>
    %c0_13 = arith.constant 0 : index
    %c1 = arith.constant 1 : index
    %c0_14 = arith.constant 0 : index
    %16 = vector.load %arg0[%c0_13, %c1, %c0_14] : memref<2x3x1024xf32, #tpu.memory_space<vmem>>, vector<2x1x1024xf32>
    %17 = vector.shape_cast %16 : vector<2x1x1024xf32> to vector<2x1024xf32>
    %cst_15 = arith.constant dense<0.000000e+00> : vector<2x64xf32>
    %18 = tpu.matmul %17, %0, %cst_15 {dimension_numbers = #tpu.dot_dimension_numbers<[1], [0], [0], [1], [0, 0, 1, 1], [], []>} : vector<2x1024xf32>, vector<1024x64xf32>, vector<2x64xf32> -> vector<2x64xf32>
    %19 = vector.broadcast %1 : vector<1x64xf32> to vector<2x64xf32>
    %20 = arith.addf %18, %19 : vector<2x64xf32>
    %cst_16 = arith.constant 0.000000e+00 : f32
    %21 = vector.broadcast %cst_16 : f32 to vector<2x64xf32>
    %22 = arith.maximumf %20, %21 : vector<2x64xf32>
    %c1_17 = arith.constant 1 : index
    %c0_18 = arith.constant 0 : index
    %c0_19 = arith.constant 0 : index
    %23 = vector.load %arg3[%c1_17, %c0_18, %c0_19] : memref<3x64x2xf32, #tpu.memory_space<vmem>>, vector<1x64x2xf32>
    %24 = vector.shape_cast %23 : vector<1x64x2xf32> to vector<64x2xf32>
    %cst_20 = arith.constant dense<0.000000e+00> : vector<2x2xf32>
    %25 = tpu.matmul %22, %24, %cst_20 {dimension_numbers = #tpu.dot_dimension_numbers<[1], [0], [0], [1], [0, 0, 1, 1], [], []>} : vector<2x64xf32>, vector<64x2xf32>, vector<2x2xf32> -> vector<2x2xf32>
    %26 = arith.addf %15, %25 : vector<2x2xf32>
    %c0_21 = arith.constant 0 : index
    %c2 = arith.constant 2 : index
    %c0_22 = arith.constant 0 : index
    %27 = vector.load %arg0[%c0_21, %c2, %c0_22] : memref<2x3x1024xf32, #tpu.memory_space<vmem>>, vector<2x1x1024xf32>
    %28 = vector.shape_cast %27 : vector<2x1x1024xf32> to vector<2x1024xf32>
    %cst_23 = arith.constant dense<0.000000e+00> : vector<2x64xf32>
    %29 = tpu.matmul %28, %0, %cst_23 {dimension_numbers = #tpu.dot_dimension_numbers<[1], [0], [0], [1], [0, 0, 1, 1], [], []>} : vector<2x1024xf32>, vector<1024x64xf32>, vector<2x64xf32> -> vector<2x64xf32>
    %30 = vector.broadcast %1 : vector<1x64xf32> to vector<2x64xf32>
    %31 = arith.addf %29, %30 : vector<2x64xf32>
    %cst_24 = arith.constant 0.000000e+00 : f32
    %32 = vector.broadcast %cst_24 : f32 to vector<2x64xf32>
    %33 = arith.maximumf %31, %32 : vector<2x64xf32>
    %c2_25 = arith.constant 2 : index
    %c0_26 = arith.constant 0 : index
    %c0_27 = arith.constant 0 : index
    %34 = vector.load %arg3[%c2_25, %c0_26, %c0_27] : memref<3x64x2xf32, #tpu.memory_space<vmem>>, vector<1x64x2xf32>
    %35 = vector.shape_cast %34 : vector<1x64x2xf32> to vector<64x2xf32>
    %cst_28 = arith.constant dense<0.000000e+00> : vector<2x2xf32>
    %36 = tpu.matmul %33, %35, %cst_28 {dimension_numbers = #tpu.dot_dimension_numbers<[1], [0], [0], [1], [0, 0, 1, 1], [], []>} : vector<2x64xf32>, vector<64x2xf32>, vector<2x2xf32> -> vector<2x2xf32>
    %37 = arith.addf %26, %36 : vector<2x2xf32>
    %c0_29 = arith.constant 0 : index
    %c0_30 = arith.constant 0 : index
    %38 = vector.load %arg5[%c0_29, %c0_30] : memref<2x2xf32, #tpu.memory_space<vmem>>, vector<2x2xf32>
    tpu.vector_store %arg5[%c0_29, %c0_30], %37 {strides = array<i32>} : memref<2x2xf32, #tpu.memory_space<vmem>>, vector<2x2xf32>,
    return
  }
}

</mosaic_0001>

<llo_original>
// kernel: tpu_custom_call.1
$region0: #{tpu_custom_call.1}
  #allocation0 [shape = 'u32[]', space=smem, size = 0x4, offset = 0x4, fixed_abs, tag = 'smem constant byte address 0x4 - core index']
  #allocation1 [shape = 'u32[72,128]{1,0:T(1,128)}', space=vmem, size = 0x9000, scoped, tag = 'internal scratch']
  %s0 = inlined_call_operand.vmem [shape: f32[2,3,1024], index: 0, kind: input, shape index: {}]
  %s1 = inlined_call_operand.vmem [shape: f32[1024,64], index: 1, kind: input, shape index: {}]
  %s2 = inlined_call_operand.vmem [shape: f32[1,64], index: 2, kind: input, shape index: {}]
  %s3 = inlined_call_operand.vmem [shape: f32[3,64,2], index: 3, kind: input, shape index: {}]
  %s4 = inlined_call_operand.vmem [shape: f32[1,2], index: 4, kind: input, shape index: {}]
  %s5 = inlined_call_operand.hbm [shape: f32[2,2], index: 5, kind: output, shape index: {}]
  %s6 = sld [smem:[#allocation0]]
  $region30: #{tpu_custom_call.1} parent=0
    _
  %s8 = ssub.s32 1, %s6
  %s9 = scalar_select 0, %s8, %s6
  $region1: #{tpu_custom_call.1} parent=0
    #allocation2 [shape = 'u8[1024]{0}', space=vmem, size = 0x400, scoped, tag = 'output window, operand 0, single buffered']
    #allocation3 [shape = 's32[1]{0}', space=sflag, size = 0x4, scoped, tag = 'scoped memory for tpu_custom_call.1']
    %10 = vsyncpa [#allocation3], 0
    // Predicated region
    $region2: #{tpu_custom_call.1} parent=1 // pred_check
      _
    $region3: #{tpu_custom_call.1} parent=1 // pred_check_branch
      %12 = sbr.rel (0) target = $region5
    $region4: #{tpu_custom_call.1} parent=1 // pred_region
      _
    $region5: #{tpu_custom_call.1} parent=1 // pred_fallthru
      _
    // Predicated region
    $region6: #{tpu_custom_call.1} parent=1 // pred_check
      _
    $region7: #{tpu_custom_call.1} parent=1 // pred_check_branch
      %14 = sbr.rel (0) target = $region9
    $region8: #{tpu_custom_call.1} parent=1 // pred_region
      _
    $region9: #{tpu_custom_call.1} parent=1 // pred_fallthru
      _
    // Predicated region
    $region10: #{tpu_custom_call.1} parent=1 // pred_check
      _
    $region11: #{tpu_custom_call.1} parent=1 // pred_check_branch
      %16 = sbr.rel (0) target = $region13
    $region12: #{tpu_custom_call.1} parent=1 // pred_region
      _
    $region13: #{tpu_custom_call.1} parent=1 // pred_fallthru
      _
    // Predicated region
    $region14: #{tpu_custom_call.1} parent=1 // pred_check
      _
    $region15: #{tpu_custom_call.1} parent=1 // pred_check_branch
      %18 = sbr.rel (0) target = $region17
    $region16: #{tpu_custom_call.1} parent=1 // pred_region
      _
    $region17: #{tpu_custom_call.1} parent=1 // pred_fallthru
      _
    // Predicated region
    $region18: #{tpu_custom_call.1} parent=1 // pred_check
      _
    $region19: #{tpu_custom_call.1} parent=1 // pred_check_branch
      %20 = sbr.rel (0) target = $region21
    $region20: #{tpu_custom_call.1} parent=1 // pred_region
      _
    $region21: #{tpu_custom_call.1} parent=1 // pred_fallthru
      _
    %v21 = vld [vmem:[%s1] sm:$0xff]
    %v22 = vld [vmem:[%s1 + $0x8] sm:$0xff]
    %v23 = vld [vmem:[%s1 + $0x10] sm:$0xff]
    %v24 = vld [vmem:[%s1 + $0x18] sm:$0xff]
    %v25 = vld [vmem:[%s1 + $0x20] sm:$0xff]
    %v26 = vld [vmem:[%s1 + $0x28] sm:$0xff]
    %v27 = vld [vmem:[%s1 + $0x30] sm:$0xff]
    %v28 = vld [vmem:[%s1 + $0x38] sm:$0xff]
    %v29 = vld [vmem:[%s1 + $0x40] sm:$0xff]
    %v30 = vld [vmem:[%s1 + $0x48] sm:$0xff]
    %v31 = vld [vmem:[%s1 + $0x50] sm:$0xff]
    %v32 = vld [vmem:[%s1 + $0x58] sm:$0xff]
    %v33 = vld [vmem:[%s1 + $0x60] sm:$0xff]
    %v34 = vld [vmem:[%s1 + $0x68] sm:$0xff]
    %v35 = vld [vmem:[%s1 + $0x70] sm:$0xff]
    %v36 = vld [vmem:[%s1 + $0x78] sm:$0xff]
    %v37 = vld [vmem:[%s1 + $0x80] sm:$0xff]
    %v38 = vld [vmem:[%s1 + $0x88] sm:$0xff]
    %v39 = vld [vmem:[%s1 + $0x90] sm:$0xff]
    %v40 = vld [vmem:[%s1 + $0x98] sm:$0xff]
    %v41 = vld [vmem:[%s1 + $0xa0] sm:$0xff]
    %v42 = vld [vmem:[%s1 + $0xa8] sm:$0xff]
    %v43 = vld [vmem:[%s1 + $0xb0] sm:$0xff]
    %v44 = vld [vmem:[%s1 + $0xb8] sm:$0xff]
    %v45 = vld [vmem:[%s1 + $0xc0] sm:$0xff]
    %v46 = vld [vmem:[%s1 + $0xc8] sm:$0xff]
    %v47 = vld [vmem:[%s1 + $0xd0] sm:$0xff]
    %v48 = vld [vmem:[%s1 + $0xd8] sm:$0xff]
    %v49 = vld [vmem:[%s1 + $0xe0] sm:$0xff]
    %v50 = vld [vmem:[%s1 + $0xe8] sm:$0xff]
    %v51 = vld [vmem:[%s1 + $0xf0] sm:$0xff]
    %v52 = vld [vmem:[%s1 + $0xf8] sm:$0xff]
    %v53 = vld [vmem:[%s1 + $0x100] sm:$0xff]
    %v54 = vld [vmem:[%s1 + $0x108] sm:$0xff]
    %v55 = vld [vmem:[%s1 + $0x110] sm:$0xff]
    %v56 = vld [vmem:[%s1 + $0x118] sm:$0xff]
    %v57 = vld [vmem:[%s1 + $0x120] sm:$0xff]
    %v58 = vld [vmem:[%s1 + $0x128] sm:$0xff]
    %v59 = vld [vmem:[%s1 + $0x130] sm:$0xff]
    %v60 = vld [vmem:[%s1 + $0x138] sm:$0xff]
    %v61 = vld [vmem:[%s1 + $0x140] sm:$0xff]
    %v62 = vld [vmem:[%s1 + $0x148] sm:$0xff]
    %v63 = vld [vmem:[%s1 + $0x150] sm:$0xff]
    %v64 = vld [vmem:[%s1 + $0x158] sm:$0xff]
    %v65 = vld [vmem:[%s1 + $0x160] sm:$0xff]
    %v66 = vld [vmem:[%s1 + $0x168] sm:$0xff]
    %v67 = vld [vmem:[%s1 + $0x170] sm:$0xff]
    %v68 = vld [vmem:[%s1 + $0x178] sm:$0xff]
    %v69 = vld [vmem:[%s1 + $0x180] sm:$0xff]
    %v70 = vld [vmem:[%s1 + $0x188] sm:$0xff]
    %v71 = vld [vmem:[%s1 + $0x190] sm:$0xff]
    %v72 = vld [vmem:[%s1 + $0x198] sm:$0xff]
    %v73 = vld [vmem:[%s1 + $0x1a0] sm:$0xff]
    %v74 = vld [vmem:[%s1 + $0x1a8] sm:$0xff]
    %v75 = vld [vmem:[%s1 + $0x1b0] sm:$0xff]
    %v76 = vld [vmem:[%s1 + $0x1b8] sm:$0xff]
    %v77 = vld [vmem:[%s1 + $0x1c0] sm:$0xff]
    %v78 = vld [vmem:[%s1 + $0x1c8] sm:$0xff]
    %v79 = vld [vmem:[%s1 + $0x1d0] sm:$0xff]
    %v80 = vld [vmem:[%s1 + $0x1d8] sm:$0xff]
    %v81 = vld [vmem:[%s1 + $0x1e0] sm:$0xff]
    %v82 = vld [vmem:[%s1 + $0x1e8] sm:$0xff]
    %v83 = vld [vmem:[%s1 + $0x1f0] sm:$0xff]
    %v84 = vld [vmem:[%s1 + $0x1f8] sm:$0xff]
    %v85 = vld [vmem:[%s1 + $0x200] sm:$0xff]
    %v86 = vld [vmem:[%s1 + $0x208] sm:$0xff]
    %v87 = vld [vmem:[%s1 + $0x210] sm:$0xff]
    %v88 = vld [vmem:[%s1 + $0x218] sm:$0xff]
    %v89 = vld [vmem:[%s1 + $0x220] sm:$0xff]
    %v90 = vld [vmem:[%s1 + $0x228] sm:$0xff]
    %v91 = vld [vmem:[%s1 + $0x230] sm:$0xff]
    %v92 = vld [vmem:[%s1 + $0x238] sm:$0xff]
    %v93 = vld [vmem:[%s1 + $0x240] sm:$0xff]
    %v94 = vld [vmem:[%s1 + $0x248] sm:$0xff]
    %v95 = vld [vmem:[%s1 + $0x250] sm:$0xff]
    %v96 = vld [vmem:[%s1 + $0x258] sm:$0xff]
    %v97 = vld [vmem:[%s1 + $0x260] sm:$0xff]
    %v98 = vld [vmem:[%s1 + $0x268] sm:$0xff]
    %v99 = vld [vmem:[%s1 + $0x270] sm:$0xff]
    %v100 = vld [vmem:[%s1 + $0x278] sm:$0xff]
    %v101 = vld [vmem:[%s1 + $0x280] sm:$0xff]
    %v102 = vld [vmem:[%s1 + $0x288] sm:$0xff]
    %v103 = vld [vmem:[%s1 + $0x290] sm:$0xff]
    %v104 = vld [vmem:[%s1 + $0x298] sm:$0xff]
    %v105 = vld [vmem:[%s1 + $0x2a0] sm:$0xff]
    %v106 = vld [vmem:[%s1 + $0x2a8] sm:$0xff]
    %v107 = vld [vmem:[%s1 + $0x2b0] sm:$0xff]
    %v108 = vld [vmem:[%s1 + $0x2b8] sm:$0xff]
    %v109 = vld [vmem:[%s1 + $0x2c0] sm:$0xff]
    %v110 = vld [vmem:[%s1 + $0x2c8] sm:$0xff]
    %v111 = vld [vmem:[%s1 + $0x2d0] sm:$0xff]
    %v112 = vld [vmem:[%s1 + $0x2d8] sm:$0xff]
    %v113 = vld [vmem:[%s1 + $0x2e0] sm:$0xff]
    %v114 = vld [vmem:[%s1 + $0x2e8] sm:$0xff]
    %v115 = vld [vmem:[%s1 + $0x2f0] sm:$0xff]
    %v116 = vld [vmem:[%s1 + $0x2f8] sm:$0xff]
    %v117 = vld [vmem:[%s1 + $0x300] sm:$0xff]
    %v118 = vld [vmem:[%s1 + $0x308] sm:$0xff]
    %v119 = vld [vmem:[%s1 + $0x310] sm:$0xff]
    %v120 = vld [vmem:[%s1 + $0x318] sm:$0xff]
    %v121 = vld [vmem:[%s1 + $0x320] sm:$0xff]
    %v122 = vld [vmem:[%s1 + $0x328] sm:$0xff]
    %v123 = vld [vmem:[%s1 + $0x330] sm:$0xff]
    %v124 = vld [vmem:[%s1 + $0x338] sm:$0xff]
    %v125 = vld [vmem:[%s1 + $0x340] sm:$0xff]
    %v126 = vld [vmem:[%s1 + $0x348] sm:$0xff]
    %v127 = vld [vmem:[%s1 + $0x350] sm:$0xff]
    %v128 = vld [vmem:[%s1 + $0x358] sm:$0xff]
    %v129 = vld [vmem:[%s1 + $0x360] sm:$0xff]
    %v130 = vld [vmem:[%s1 + $0x368] sm:$0xff]
    %v131 = vld [vmem:[%s1 + $0x370] sm:$0xff]
    %v132 = vld [vmem:[%s1 + $0x378] sm:$0xff]
    %v133 = vld [vmem:[%s1 + $0x380] sm:$0xff]
    %v134 = vld [vmem:[%s1 + $0x388] sm:$0xff]
    %v135 = vld [vmem:[%s1 + $0x390] sm:$0xff]
    %v136 = vld [vmem:[%s1 + $0x398] sm:$0xff]
    %v137 = vld [vmem:[%s1 + $0x3a0] sm:$0xff]
    %v138 = vld [vmem:[%s1 + $0x3a8] sm:$0xff]
    %v139 = vld [vmem:[%s1 + $0x3b0] sm:$0xff]
    %v140 = vld [vmem:[%s1 + $0x3b8] sm:$0xff]
    %v141 = vld [vmem:[%s1 + $0x3c0] sm:$0xff]
    %v142 = vld [vmem:[%s1 + $0x3c8] sm:$0xff]
    %v143 = vld [vmem:[%s1 + $0x3d0] sm:$0xff]
    %v144 = vld [vmem:[%s1 + $0x3d8] sm:$0xff]
    %v145 = vld [vmem:[%s1 + $0x3e0] sm:$0xff]
    %v146 = vld [vmem:[%s1 + $0x3e8] sm:$0xff]
    %v147 = vld [vmem:[%s1 + $0x3f0] sm:$0xff]
    %v148 = vld [vmem:[%s1 + $0x3f8] sm:$0xff]
    %v149 = vld [vmem:[%s2] sm:$0x1]
    %v150 = vld [vmem:[%s4] sm:$0x1]
    %v152 = vperm.slane %v150, 0
    %v154 = vld [vmem:[%s0] ss:$4 sm:$0xff]
    %s155 = scalar_lea.vmem %s0, 32
    %v156 = vld [vmem:[%s155] ss:$4 sm:$0xff]
    %v158 = vperm.slane %v149, 0
    %162 = vst [vmem:[#allocation1] ss:$9 sm:$0xff] %v154
    %s163 = scalar_lea.vmem [#allocation1], 1
    %164 = vst [vmem:[%s163] ss:$9 sm:$0xff] %v156
    %v165 = vld [vmem:[#allocation1] sm:$0xff]
    %v166 = vld [vmem:[#allocation1 + $0x9] sm:$0xff]
    %v167 = vld [vmem:[#allocation1 + $0x12] sm:$0xff]
    %v168 = vld [vmem:[#allocation1 + $0x1b] sm:$0xff]
    %v169 = vld [vmem:[#allocation1 + $0x24] sm:$0xff]
    %v170 = vld [vmem:[#allocation1 + $0x2d] sm:$0xff]
    %v171 = vld [vmem:[#allocation1 + $0x36] sm:$0xff]
    %v172 = vld [vmem:[#allocation1 + $0x3f] sm:$0xff]
    %181 = vmatpush.msra.mxu0 %v36
    %182 = vmatpush.msra.mxu0 %v35
    %183 = vmatpush.msra.mxu0 %v34
    %184 = vmatpush.msra.mxu0 %v33
    %185 = vmatpush.msra.mxu0 %v32
    %186 = vmatpush.msra.mxu0 %v31
    %187 = vmatpush.msra.mxu0 %v30
    %188 = vmatpush.msra.mxu0 %v29
    %189 = vmatpush.msra.mxu0 %v28
    %190 = vmatpush.msra.mxu0 %v27
    %191 = vmatpush.msra.mxu0 %v26
    %192 = vmatpush.msra.mxu0 %v25
    %193 = vmatpush.msra.mxu0 %v24
    %194 = vmatpush.msra.mxu0 %v23
    %195 = vmatpush.msra.mxu0 %v22
    %196 = vmatpush.msra.mxu0 %v21
    %197 = vmatmul.f32.gmra.mxu0 %v165
    %v198 = vpop.f32.mrf.mxu0
    %v199 = vadd.f32 %v158, %v198
    %200 = vdwg.mxu0
    %201 = vmatpush.msra.mxu0 %v52
    %202 = vmatpush.msra.mxu0 %v51
    %203 = vmatpush.msra.mxu0 %v50
    %204 = vmatpush.msra.mxu0 %v49
    %205 = vmatpush.msra.mxu0 %v48
    %206 = vmatpush.msra.mxu0 %v47
    %207 = vmatpush.msra.mxu0 %v46
    %208 = vmatpush.msra.mxu0 %v45
    %209 = vmatpush.msra.mxu0 %v44
    %210 = vmatpush.msra.mxu0 %v43
    %211 = vmatpush.msra.mxu0 %v42
    %212 = vmatpush.msra.mxu0 %v41
    %213 = vmatpush.msra.mxu0 %v40
    %214 = vmatpush.msra.mxu0 %v39
    %215 = vmatpush.msra.mxu0 %v38
    %216 = vmatpush.msra.mxu0 %v37
    %217 = vmatmul.f32.gmra.mxu0 %v166
    %v218 = vpop.f32.mrf.mxu0
    %v219 = vadd.f32 %v199, %v218
    %220 = vdwg.mxu0
    %221 = vmatpush.msra.mxu0 %v68
    %222 = vmatpush.msra.mxu0 %v67
    %223 = vmatpush.msra.mxu0 %v66
    %224 = vmatpush.msra.mxu0 %v65
    %225 = vmatpush.msra.mxu0 %v64
    %226 = vmatpush.msra.mxu0 %v63
    %227 = vmatpush.msra.mxu0 %v62
    %228 = vmatpush.msra.mxu0 %v61
    %229 = vmatpush.msra.mxu0 %v60
    %230 = vmatpush.msra.mxu0 %v59
    %231 = vmatpush.msra.mxu0 %v58
    %232 = vmatpush.msra.mxu0 %v57
    %233 = vmatpush.msra.mxu0 %v56
    %234 = vmatpush.msra.mxu0 %v55
    %235 = vmatpush.msra.mxu0 %v54
    %236 = vmatpush.msra.mxu0 %v53
    %237 = vmatmul.f32.gmra.mxu0 %v167
    %v238 = vpop.f32.mrf.mxu0
    %v239 = vadd.f32 %v219, %v238
    %240 = vdwg.mxu0
    %241 = vmatpush.msra.mxu0 %v84
    %242 = vmatpush.msra.mxu0 %v83
    %243 = vmatpush.msra.mxu0 %v82
    %244 = vmatpush.msra.mxu0 %v81
    %245 = vmatpush.msra.mxu0 %v80
    %246 = vmatpush.msra.mxu0 %v79
    %247 = vmatpush.msra.mxu0 %v78
    %248 = vmatpush.msra.mxu0 %v77
    %249 = vmatpush.msra.mxu0 %v76
    %250 = vmatpush.msra.mxu0 %v75
    %251 = vmatpush.msra.mxu0 %v74
    %252 = vmatpush.msra.mxu0 %v73
    %253 = vmatpush.msra.mxu0 %v72
    %254 = vmatpush.msra.mxu0 %v71
    %255 = vmatpush.msra.mxu0 %v70
    %256 = vmatpush.msra.mxu0 %v69
    %257 = vmatmul.f32.gmra.mxu0 %v168
    %v258 = vpop.f32.mrf.mxu0
    %v259 = vadd.f32 %v239, %v258
    %260 = vdwg.mxu0
    %261 = vmatpush.msra.mxu0 %v100
    %262 = vmatpush.msra.mxu0 %v99
    %263 = vmatpush.msra.mxu0 %v98
    %264 = vmatpush.msra.mxu0 %v97
    %265 = vmatpush.msra.mxu0 %v96
    %266 = vmatpush.msra.mxu0 %v95
    %267 = vmatpush.msra.mxu0 %v94
    %268 = vmatpush.msra.mxu0 %v93
    %269 = vmatpush.msra.mxu0 %v92
    %270 = vmatpush.msra.mxu0 %v91
    %271 = vmatpush.msra.mxu0 %v90
    %272 = vmatpush.msra.mxu0 %v89
    %273 = vmatpush.msra.mxu0 %v88
    %274 = vmatpush.msra.mxu0 %v87
    %275 = vmatpush.msra.mxu0 %v86
    %276 = vmatpush.msra.mxu0 %v85
    %277 = vmatmul.f32.gmra.mxu0 %v169
    %v278 = vpop.f32.mrf.mxu0
    %v279 = vadd.f32 %v259, %v278
    %280 = vdwg.mxu0
    %281 = vmatpush.msra.mxu0 %v116
    %282 = vmatpush.msra.mxu0 %v115
    %283 = vmatpush.msra.mxu0 %v114
    %284 = vmatpush.msra.mxu0 %v113
    %285 = vmatpush.msra.mxu0 %v112
    %286 = vmatpush.msra.mxu0 %v111
    %287 = vmatpush.msra.mxu0 %v110
    %288 = vmatpush.msra.mxu0 %v109
    %289 = vmatpush.msra.mxu0 %v108
    %290 = vmatpush.msra.mxu0 %v107
    %291 = vmatpush.msra.mxu0 %v106
    %292 = vmatpush.msra.mxu0 %v105
    %293 = vmatpush.msra.mxu0 %v104
    %294 = vmatpush.msra.mxu0 %v103
    %295 = vmatpush.msra.mxu0 %v102
    %296 = vmatpush.msra.mxu0 %v101
    %297 = vmatmul.f32.gmra.mxu0 %v170
    %v298 = vpop.f32.mrf.mxu0
    %v299 = vadd.f32 %v279, %v298
    %300 = vdwg.mxu0
    %301 = vmatpush.msra.mxu0 %v132
    %302 = vmatpush.msra.mxu0 %v131
    %303 = vmatpush.msra.mxu0 %v130
    %304 = vmatpush.msra.mxu0 %v129
    %305 = vmatpush.msra.mxu0 %v128
    %306 = vmatpush.msra.mxu0 %v127
    %307 = vmatpush.msra.mxu0 %v126
    %308 = vmatpush.msra.mxu0 %v125
    %309 = vmatpush.msra.mxu0 %v124
    %310 = vmatpush.msra.mxu0 %v123
    %311 = vmatpush.msra.mxu0 %v122
    %312 = vmatpush.msra.mxu0 %v121
    %313 = vmatpush.msra.mxu0 %v120
    %314 = vmatpush.msra.mxu0 %v119
    %315 = vmatpush.msra.mxu0 %v118
    %316 = vmatpush.msra.mxu0 %v117
    %317 = vmatmul.f32.gmra.mxu0 %v171
    %v318 = vpop.f32.mrf.mxu0
    %v319 = vadd.f32 %v299, %v318
    %320 = vdwg.mxu0
    %321 = vmatpush.msra.mxu0 %v148
    %322 = vmatpush.msra.mxu0 %v147
    %323 = vmatpush.msra.mxu0 %v146
    %324 = vmatpush.msra.mxu0 %v145
    %325 = vmatpush.msra.mxu0 %v144
    %326 = vmatpush.msra.mxu0 %v143
    %327 = vmatpush.msra.mxu0 %v142
    %328 = vmatpush.msra.mxu0 %v141
    %329 = vmatpush.msra.mxu0 %v140
    %330 = vmatpush.msra.mxu0 %v139
    %331 = vmatpush.msra.mxu0 %v138
    %332 = vmatpush.msra.mxu0 %v137
    %333 = vmatpush.msra.mxu0 %v136
    %334 = vmatpush.msra.mxu0 %v135
    %335 = vmatpush.msra.mxu0 %v134
    %336 = vmatpush.msra.mxu0 %v133
    %337 = vmatmul.f32.gmra.mxu0 %v172
    %v338 = vpop.f32.mrf.mxu0
    %v339 = vadd.f32 %v319, %v338
    %340 = vdwg.mxu0
    %v341 = vmax.f32 %v339, 0.0
    %v342 = vld [vmem:[%s3] sm:$0xff]
    %v343 = vld [vmem:[%s3 + $0x8] sm:$0xff]
    %v344 = vld [vmem:[%s3 + $0x10] sm:$0xff]
    %v345 = vld [vmem:[%s3 + $0x18] sm:$0xff]
    %v346 = vld [vmem:[%s3 + $0x20] sm:$0xff]
    %v347 = vld [vmem:[%s3 + $0x28] sm:$0xff]
    %v348 = vld [vmem:[%s3 + $0x30] sm:$0xff]
    %v349 = vld [vmem:[%s3 + $0x38] sm:$0xff]
    %vm350 = vcmask 523264
    %v352 = vsel %vm350, %v341, 0
    %354 = vmatpush.msra.mxu0 0.0
    %355 = vmatpush.msra.mxu0 0.0
    %356 = vmatpush.msra.mxu0 0.0
    %357 = vmatpush.msra.mxu0 0.0
    %358 = vmatpush.msra.mxu0 0.0
    %359 = vmatpush.msra.mxu0 0.0
    %360 = vmatpush.msra.mxu0 0.0
    %361 = vmatpush.msra.mxu0 0.0
    %362 = vmatpush.msra.mxu0 %v349
    %363 = vmatpush.msra.mxu0 %v348
    %364 = vmatpush.msra.mxu0 %v347
    %365 = vmatpush.msra.mxu0 %v346
    %366 = vmatpush.msra.mxu0 %v345
    %367 = vmatpush.msra.mxu0 %v344
    %368 = vmatpush.msra.mxu0 %v343
    %369 = vmatpush.msra.mxu0 %v342
    %370 = vmatmul.f32.gmra.mxu0 %v352
    %v371 = vpop.f32.mrf.mxu0
    %v372 = vadd.f32 0.0, %v371
    %373 = vdwg.mxu0
    %v374 = vadd.f32 %v152, %v372
    %s375 = scalar_lea.vmem %s0, 1
    %v376 = vld [vmem:[%s375] ss:$4 sm:$0xff]
    %s377 = scalar_lea.vmem %s0, 33
    %v378 = vld [vmem:[%s377] ss:$4 sm:$0xff]
    %381 = vst [vmem:[#allocation1] ss:$9 sm:$0xff] %v376
    %s382 = scalar_lea.vmem [#allocation1], 1
    %383 = vst [vmem:[%s382] ss:$9 sm:$0xff] %v378
    %v384 = vld [vmem:[#allocation1] sm:$0xff]
    %v385 = vld [vmem:[#allocation1 + $0x9] sm:$0xff]
    %v386 = vld [vmem:[#allocation1 + $0x12] sm:$0xff]
    %v387 = vld [vmem:[#allocation1 + $0x1b] sm:$0xff]
    %v388 = vld [vmem:[#allocation1 + $0x24] sm:$0xff]
    %v389 = vld [vmem:[#allocation1 + $0x2d] sm:$0xff]
    %v390 = vld [vmem:[#allocation1 + $0x36] sm:$0xff]
    %v391 = vld [vmem:[#allocation1 + $0x3f] sm:$0xff]
    %400 = vmatpush.msra.mxu0 %v36
    %401 = vmatpush.msra.mxu0 %v35
    %402 = vmatpush.msra.mxu0 %v34
    %403 = vmatpush.msra.mxu0 %v33
    %404 = vmatpush.msra.mxu0 %v32
    %405 = vmatpush.msra.mxu0 %v31
    %406 = vmatpush.msra.mxu0 %v30
    %407 = vmatpush.msra.mxu0 %v29
    %408 = vmatpush.msra.mxu0 %v28
    %409 = vmatpush.msra.mxu0 %v27
    %410 = vmatpush.msra.mxu0 %v26
    %411 = vmatpush.msra.mxu0 %v25
    %412 = vmatpush.msra.mxu0 %v24
    %413 = vmatpush.msra.mxu0 %v23
    %414 = vmatpush.msra.mxu0 %v22
    %415 = vmatpush.msra.mxu0 %v21
    %416 = vmatmul.f32.gmra.mxu0 %v384
    %v417 = vpop.f32.mrf.mxu0
    %v418 = vadd.f32 %v158, %v417
    %419 = vdwg.mxu0
    %420 = vmatpush.msra.mxu0 %v52
    %421 = vmatpush.msra.mxu0 %v51
    %422 = vmatpush.msra.mxu0 %v50
    %423 = vmatpush.msra.mxu0 %v49
    %424 = vmatpush.msra.mxu0 %v48
    %425 = vmatpush.msra.mxu0 %v47
    %426 = vmatpush.msra.mxu0 %v46
    %427 = vmatpush.msra.mxu0 %v45
    %428 = vmatpush.msra.mxu0 %v44
    %429 = vmatpush.msra.mxu0 %v43
    %430 = vmatpush.msra.mxu0 %v42
    %431 = vmatpush.msra.mxu0 %v41
    %432 = vmatpush.msra.mxu0 %v40
    %433 = vmatpush.msra.mxu0 %v39
    %434 = vmatpush.msra.mxu0 %v38
    %435 = vmatpush.msra.mxu0 %v37
    %436 = vmatmul.f32.gmra.mxu0 %v385
    %v437 = vpop.f32.mrf.mxu0
    %v438 = vadd.f32 %v418, %v437
    %439 = vdwg.mxu0
    %440 = vmatpush.msra.mxu0 %v68
    %441 = vmatpush.msra.mxu0 %v67
    %442 = vmatpush.msra.mxu0 %v66
    %443 = vmatpush.msra.mxu0 %v65
    %444 = vmatpush.msra.mxu0 %v64
    %445 = vmatpush.msra.mxu0 %v63
    %446 = vmatpush.msra.mxu0 %v62
    %447 = vmatpush.msra.mxu0 %v61
    %448 = vmatpush.msra.mxu0 %v60
    %449 = vmatpush.msra.mxu0 %v59
    %450 = vmatpush.msra.mxu0 %v58
    %451 = vmatpush.msra.mxu0 %v57
    %452 = vmatpush.msra.mxu0 %v56
    %453 = vmatpush.msra.mxu0 %v55
    %454 = vmatpush.msra.mxu0 %v54
    %455 = vmatpush.msra.mxu0 %v53
    %456 = vmatmul.f32.gmra.mxu0 %v386
    %v457 = vpop.f32.mrf.mxu0
    %v458 = vadd.f32 %v438, %v457
    %459 = vdwg.mxu0
    %460 = vmatpush.msra.mxu0 %v84
    %461 = vmatpush.msra.mxu0 %v83
    %462 = vmatpush.msra.mxu0 %v82
    %463 = vmatpush.msra.mxu0 %v81
    %464 = vmatpush.msra.mxu0 %v80
    %465 = vmatpush.msra.mxu0 %v79
    %466 = vmatpush.msra.mxu0 %v78
    %467 = vmatpush.msra.mxu0 %v77
    %468 = vmatpush.msra.mxu0 %v76
    %469 = vmatpush.msra.mxu0 %v75
    %470 = vmatpush.msra.mxu0 %v74
    %471 = vmatpush.msra.mxu0 %v73
    %472 = vmatpush.msra.mxu0 %v72
    %473 = vmatpush.msra.mxu0 %v71
    %474 = vmatpush.msra.mxu0 %v70
    %475 = vmatpush.msra.mxu0 %v69
    %476 = vmatmul.f32.gmra.mxu0 %v387
    %v477 = vpop.f32.mrf.mxu0
    %v478 = vadd.f32 %v458, %v477
    %479 = vdwg.mxu0
    %480 = vmatpush.msra.mxu0 %v100
    %481 = vmatpush.msra.mxu0 %v99
    %482 = vmatpush.msra.mxu0 %v98
    %483 = vmatpush.msra.mxu0 %v97
    %484 = vmatpush.msra.mxu0 %v96
    %485 = vmatpush.msra.mxu0 %v95
    %486 = vmatpush.msra.mxu0 %v94
    %487 = vmatpush.msra.mxu0 %v93
    %488 = vmatpush.msra.mxu0 %v92
    %489 = vmatpush.msra.mxu0 %v91
    %490 = vmatpush.msra.mxu0 %v90
    %491 = vmatpush.msra.mxu0 %v89
    %492 = vmatpush.msra.mxu0 %v88
    %493 = vmatpush.msra.mxu0 %v87
    %494 = vmatpush.msra.mxu0 %v86
    %495 = vmatpush.msra.mxu0 %v85
    %496 = vmatmul.f32.gmra.mxu0 %v388
    %v497 = vpop.f32.mrf.mxu0
    %v498 = vadd.f32 %v478, %v497
    %499 = vdwg.mxu0
    %500 = vmatpush.msra.mxu0 %v116
    %501 = vmatpush.msra.mxu0 %v115
    %502 = vmatpush.msra.mxu0 %v114
    %503 = vmatpush.msra.mxu0 %v113
    %504 = vmatpush.msra.mxu0 %v112
    %505 = vmatpush.msra.mxu0 %v111
    %506 = vmatpush.msra.mxu0 %v110
    %507 = vmatpush.msra.mxu0 %v109
    %508 = vmatpush.msra.mxu0 %v108
    %509 = vmatpush.msra.mxu0 %v107
    %510 = vmatpush.msra.mxu0 %v106
    %511 = vmatpush.msra.mxu0 %v105
    %512 = vmatpush.msra.mxu0 %v104
    %513 = vmatpush.msra.mxu0 %v103
    %514 = vmatpush.msra.mxu0 %v102
    %515 = vmatpush.msra.mxu0 %v101
    %516 = vmatmul.f32.gmra.mxu0 %v389
    %v517 = vpop.f32.mrf.mxu0
    %v518 = vadd.f32 %v498, %v517
    %519 = vdwg.mxu0
    %520 = vmatpush.msra.mxu0 %v132
    %521 = vmatpush.msra.mxu0 %v131
    %522 = vmatpush.msra.mxu0 %v130
    %523 = vmatpush.msra.mxu0 %v129
    %524 = vmatpush.msra.mxu0 %v128
    %525 = vmatpush.msra.mxu0 %v127
    %526 = vmatpush.msra.mxu0 %v126
    %527 = vmatpush.msra.mxu0 %v125
    %528 = vmatpush.msra.mxu0 %v124
    %529 = vmatpush.msra.mxu0 %v123
    %530 = vmatpush.msra.mxu0 %v122
    %531 = vmatpush.msra.mxu0 %v121
    %532 = vmatpush.msra.mxu0 %v120
    %533 = vmatpush.msra.mxu0 %v119
    %534 = vmatpush.msra.mxu0 %v118
    %535 = vmatpush.msra.mxu0 %v117
    %536 = vmatmul.f32.gmra.mxu0 %v390
    %v537 = vpop.f32.mrf.mxu0
    %v538 = vadd.f32 %v518, %v537
    %539 = vdwg.mxu0
    %540 = vmatpush.msra.mxu0 %v148
    %541 = vmatpush.msra.mxu0 %v147
    %542 = vmatpush.msra.mxu0 %v146
    %543 = vmatpush.msra.mxu0 %v145
    %544 = vmatpush.msra.mxu0 %v144
    %545 = vmatpush.msra.mxu0 %v143
    %546 = vmatpush.msra.mxu0 %v142
    %547 = vmatpush.msra.mxu0 %v141
    %548 = vmatpush.msra.mxu0 %v140
    %549 = vmatpush.msra.mxu0 %v139
    %550 = vmatpush.msra.mxu0 %v138
    %551 = vmatpush.msra.mxu0 %v137
    %552 = vmatpush.msra.mxu0 %v136
    %553 = vmatpush.msra.mxu0 %v135
    %554 = vmatpush.msra.mxu0 %v134
    %555 = vmatpush.msra.mxu0 %v133
    %556 = vmatmul.f32.gmra.mxu0 %v391
    %v557 = vpop.f32.mrf.mxu0
    %v558 = vadd.f32 %v538, %v557
    %559 = vdwg.mxu0
    %v560 = vmax.f32 %v558, 0.0
    %s561 = scalar_lea.vmem %s3, 64
    %v562 = vld [vmem:[%s561] sm:$0xff]
    %v563 = vld [vmem:[%s561 + $0x8] sm:$0xff]
    %v564 = vld [vmem:[%s561 + $0x10] sm:$0xff]
    %v565 = vld [vmem:[%s561 + $0x18] sm:$0xff]
    %v566 = vld [vmem:[%s561 + $0x20] sm:$0xff]
    %v567 = vld [vmem:[%s561 + $0x28] sm:$0xff]
    %v568 = vld [vmem:[%s561 + $0x30] sm:$0xff]
    %v569 = vld [vmem:[%s561 + $0x38] sm:$0xff]
    %v571 = vsel %vm350, %v560, 0
    %573 = vmatpush.msra.mxu0 0.0
    %574 = vmatpush.msra.mxu0 0.0
    %575 = vmatpush.msra.mxu0 0.0
    %576 = vmatpush.msra.mxu0 0.0
    %577 = vmatpush.msra.mxu0 0.0
    %578 = vmatpush.msra.mxu0 0.0
    %579 = vmatpush.msra.mxu0 0.0
    %580 = vmatpush.msra.mxu0 0.0
    %581 = vmatpush.msra.mxu0 %v569
    %582 = vmatpush.msra.mxu0 %v568
    %583 = vmatpush.msra.mxu0 %v567
    %584 = vmatpush.msra.mxu0 %v566
    %585 = vmatpush.msra.mxu0 %v565
    %586 = vmatpush.msra.mxu0 %v564
    %587 = vmatpush.msra.mxu0 %v563
    %588 = vmatpush.msra.mxu0 %v562
    %589 = vmatmul.f32.gmra.mxu0 %v571
    %v590 = vpop.f32.mrf.mxu0
    %v591 = vadd.f32 0.0, %v590
    %592 = vdwg.mxu0
    %v593 = vadd.f32 %v374, %v591
    %s594 = scalar_lea.vmem %s0, 2
    %v595 = vld [vmem:[%s594] ss:$4 sm:$0xff]
    %s596 = scalar_lea.vmem %s0, 34
    %v597 = vld [vmem:[%s596] ss:$4 sm:$0xff]
    %600 = vst [vmem:[#allocation1] ss:$9 sm:$0xff] %v595
    %s601 = scalar_lea.vmem [#allocation1], 1
    %602 = vst [vmem:[%s601] ss:$9 sm:$0xff] %v597
    %v603 = vld [vmem:[#allocation1] sm:$0xff]
    %v604 = vld [vmem:[#allocation1 + $0x9] sm:$0xff]
    %v605 = vld [vmem:[#allocation1 + $0x12] sm:$0xff]
    %v606 = vld [vmem:[#allocation1 + $0x1b] sm:$0xff]
    %v607 = vld [vmem:[#allocation1 + $0x24] sm:$0xff]
    %v608 = vld [vmem:[#allocation1 + $0x2d] sm:$0xff]
    %v609 = vld [vmem:[#allocation1 + $0x36] sm:$0xff]
    %v610 = vld [vmem:[#allocation1 + $0x3f] sm:$0xff]
    %619 = vmatpush.msra.mxu0 %v36
    %620 = vmatpush.msra.mxu0 %v35
    %621 = vmatpush.msra.mxu0 %v34
    %622 = vmatpush.msra.mxu0 %v33
    %623 = vmatpush.msra.mxu0 %v32
    %624 = vmatpush.msra.mxu0 %v31
    %625 = vmatpush.msra.mxu0 %v30
    %626 = vmatpush.msra.mxu0 %v29
    %627 = vmatpush.msra.mxu0 %v28
    %628 = vmatpush.msra.mxu0 %v27
    %629 = vmatpush.msra.mxu0 %v26
    %630 = vmatpush.msra.mxu0 %v25
    %631 = vmatpush.msra.mxu0 %v24
    %632 = vmatpush.msra.mxu0 %v23
    %633 = vmatpush.msra.mxu0 %v22
    %634 = vmatpush.msra.mxu0 %v21
    %635 = vmatmul.f32.gmra.mxu0 %v603
    %v636 = vpop.f32.mrf.mxu0
    %v637 = vadd.f32 %v158, %v636
    %638 = vdwg.mxu0
    %639 = vmatpush.msra.mxu0 %v52
    %640 = vmatpush.msra.mxu0 %v51
    %641 = vmatpush.msra.mxu0 %v50
    %642 = vmatpush.msra.mxu0 %v49
    %643 = vmatpush.msra.mxu0 %v48
    %644 = vmatpush.msra.mxu0 %v47
    %645 = vmatpush.msra.mxu0 %v46
    %646 = vmatpush.msra.mxu0 %v45
    %647 = vmatpush.msra.mxu0 %v44
    %648 = vmatpush.msra.mxu0 %v43
    %649 = vmatpush.msra.mxu0 %v42
    %650 = vmatpush.msra.mxu0 %v41
    %651 = vmatpush.msra.mxu0 %v40
    %652 = vmatpush.msra.mxu0 %v39
    %653 = vmatpush.msra.mxu0 %v38
    %654 = vmatpush.msra.mxu0 %v37
    %655 = vmatmul.f32.gmra.mxu0 %v604
    %v656 = vpop.f32.mrf.mxu0
    %v657 = vadd.f32 %v637, %v656
    %658 = vdwg.mxu0
    %659 = vmatpush.msra.mxu0 %v68
    %660 = vmatpush.msra.mxu0 %v67
    %661 = vmatpush.msra.mxu0 %v66
    %662 = vmatpush.msra.mxu0 %v65
    %663 = vmatpush.msra.mxu0 %v64
    %664 = vmatpush.msra.mxu0 %v63
    %665 = vmatpush.msra.mxu0 %v62
    %666 = vmatpush.msra.mxu0 %v61
    %667 = vmatpush.msra.mxu0 %v60
    %668 = vmatpush.msra.mxu0 %v59
    %669 = vmatpush.msra.mxu0 %v58
    %670 = vmatpush.msra.mxu0 %v57
    %671 = vmatpush.msra.mxu0 %v56
    %672 = vmatpush.msra.mxu0 %v55
    %673 = vmatpush.msra.mxu0 %v54
    %674 = vmatpush.msra.mxu0 %v53
    %675 = vmatmul.f32.gmra.mxu0 %v605
    %v676 = vpop.f32.mrf.mxu0
    %v677 = vadd.f32 %v657, %v676
    %678 = vdwg.mxu0
    %679 = vmatpush.msra.mxu0 %v84
    %680 = vmatpush.msra.mxu0 %v83
    %681 = vmatpush.msra.mxu0 %v82
    %682 = vmatpush.msra.mxu0 %v81
    %683 = vmatpush.msra.mxu0 %v80
    %684 = vmatpush.msra.mxu0 %v79
    %685 = vmatpush.msra.mxu0 %v78
    %686 = vmatpush.msra.mxu0 %v77
    %687 = vmatpush.msra.mxu0 %v76
    %688 = vmatpush.msra.mxu0 %v75
    %689 = vmatpush.msra.mxu0 %v74
    %690 = vmatpush.msra.mxu0 %v73
    %691 = vmatpush.msra.mxu0 %v72
    %692 = vmatpush.msra.mxu0 %v71
    %693 = vmatpush.msra.mxu0 %v70
    %694 = vmatpush.msra.mxu0 %v69
    %695 = vmatmul.f32.gmra.mxu0 %v606
    %v696 = vpop.f32.mrf.mxu0
    %v697 = vadd.f32 %v677, %v696
    %698 = vdwg.mxu0
    %699 = vmatpush.msra.mxu0 %v100
    %700 = vmatpush.msra.mxu0 %v99
    %701 = vmatpush.msra.mxu0 %v98
    %702 = vmatpush.msra.mxu0 %v97
    %703 = vmatpush.msra.mxu0 %v96
    %704 = vmatpush.msra.mxu0 %v95
    %705 = vmatpush.msra.mxu0 %v94
    %706 = vmatpush.msra.mxu0 %v93
    %707 = vmatpush.msra.mxu0 %v92
    %708 = vmatpush.msra.mxu0 %v91
    %709 = vmatpush.msra.mxu0 %v90
    %710 = vmatpush.msra.mxu0 %v89
    %711 = vmatpush.msra.mxu0 %v88
    %712 = vmatpush.msra.mxu0 %v87
    %713 = vmatpush.msra.mxu0 %v86
    %714 = vmatpush.msra.mxu0 %v85
    %715 = vmatmul.f32.gmra.mxu0 %v607
    %v716 = vpop.f32.mrf.mxu0
    %v717 = vadd.f32 %v697, %v716
    %718 = vdwg.mxu0
    %719 = vmatpush.msra.mxu0 %v116
    %720 = vmatpush.msra.mxu0 %v115
    %721 = vmatpush.msra.mxu0 %v114
    %722 = vmatpush.msra.mxu0 %v113
    %723 = vmatpush.msra.mxu0 %v112
    %724 = vmatpush.msra.mxu0 %v111
    %725 = vmatpush.msra.mxu0 %v110
    %726 = vmatpush.msra.mxu0 %v109
    %727 = vmatpush.msra.mxu0 %v108
    %728 = vmatpush.msra.mxu0 %v107
    %729 = vmatpush.msra.mxu0 %v106
    %730 = vmatpush.msra.mxu0 %v105
    %731 = vmatpush.msra.mxu0 %v104
    %732 = vmatpush.msra.mxu0 %v103
    %733 = vmatpush.msra.mxu0 %v102
    %734 = vmatpush.msra.mxu0 %v101
    %735 = vmatmul.f32.gmra.mxu0 %v608
    %v736 = vpop.f32.mrf.mxu0
    %v737 = vadd.f32 %v717, %v736
    %738 = vdwg.mxu0
    %739 = vmatpush.msra.mxu0 %v132
    %740 = vmatpush.msra.mxu0 %v131
    %741 = vmatpush.msra.mxu0 %v130
    %742 = vmatpush.msra.mxu0 %v129
    %743 = vmatpush.msra.mxu0 %v128
    %744 = vmatpush.msra.mxu0 %v127
    %745 = vmatpush.msra.mxu0 %v126
    %746 = vmatpush.msra.mxu0 %v125
    %747 = vmatpush.msra.mxu0 %v124
    %748 = vmatpush.msra.mxu0 %v123
    %749 = vmatpush.msra.mxu0 %v122
    %750 = vmatpush.msra.mxu0 %v121
    %751 = vmatpush.msra.mxu0 %v120
    %752 = vmatpush.msra.mxu0 %v119
    %753 = vmatpush.msra.mxu0 %v118
    %754 = vmatpush.msra.mxu0 %v117
    %755 = vmatmul.f32.gmra.mxu0 %v609
    %v756 = vpop.f32.mrf.mxu0
    %v757 = vadd.f32 %v737, %v756
    %758 = vdwg.mxu0
    %759 = vmatpush.msra.mxu0 %v148
    %760 = vmatpush.msra.mxu0 %v147
    %761 = vmatpush.msra.mxu0 %v146
    %762 = vmatpush.msra.mxu0 %v145
    %763 = vmatpush.msra.mxu0 %v144
    %764 = vmatpush.msra.mxu0 %v143
    %765 = vmatpush.msra.mxu0 %v142
    %766 = vmatpush.msra.mxu0 %v141
    %767 = vmatpush.msra.mxu0 %v140
    %768 = vmatpush.msra.mxu0 %v139
    %769 = vmatpush.msra.mxu0 %v138
    %770 = vmatpush.msra.mxu0 %v137
    %771 = vmatpush.msra.mxu0 %v136
    %772 = vmatpush.msra.mxu0 %v135
    %773 = vmatpush.msra.mxu0 %v134
    %774 = vmatpush.msra.mxu0 %v133
    %775 = vmatmul.f32.gmra.mxu0 %v610
    %v776 = vpop.f32.mrf.mxu0
    %v777 = vadd.f32 %v757, %v776
    %778 = vdwg.mxu0
    %v779 = vmax.f32 %v777, 0.0
    %s780 = scalar_lea.vmem %s3, 128
    %v781 = vld [vmem:[%s780] sm:$0xff]
    %v782 = vld [vmem:[%s780 + $0x8] sm:$0xff]
    %v783 = vld [vmem:[%s780 + $0x10] sm:$0xff]
    %v784 = vld [vmem:[%s780 + $0x18] sm:$0xff]
    %v785 = vld [vmem:[%s780 + $0x20] sm:$0xff]
    %v786 = vld [vmem:[%s780 + $0x28] sm:$0xff]
    %v787 = vld [vmem:[%s780 + $0x30] sm:$0xff]
    %v788 = vld [vmem:[%s780 + $0x38] sm:$0xff]
    %v790 = vsel %vm350, %v779, 0
    %792 = vmatpush.msra.mxu0 0.0
    %793 = vmatpush.msra.mxu0 0.0
    %794 = vmatpush.msra.mxu0 0.0
    %795 = vmatpush.msra.mxu0 0.0
    %796 = vmatpush.msra.mxu0 0.0
    %797 = vmatpush.msra.mxu0 0.0
    %798 = vmatpush.msra.mxu0 0.0
    %799 = vmatpush.msra.mxu0 0.0
    %800 = vmatpush.msra.mxu0 %v788
    %801 = vmatpush.msra.mxu0 %v787
    %802 = vmatpush.msra.mxu0 %v786
    %803 = vmatpush.msra.mxu0 %v785
    %804 = vmatpush.msra.mxu0 %v784
    %805 = vmatpush.msra.mxu0 %v783
    %806 = vmatpush.msra.mxu0 %v782
    %807 = vmatpush.msra.mxu0 %v781
    %808 = vmatmul.f32.gmra.mxu0 %v790
    %v809 = vpop.f32.mrf.mxu0
    %v810 = vadd.f32 0.0, %v809
    %811 = vdwg.mxu0
    %v812 = vadd.f32 %v593, %v810
    %vm813 = vcmask 9216
    %814 = vst.msk [vmem:[#allocation2] sm:$0x3] %vm813, %v812
    // Predicated region
    $region22: #{tpu_custom_call.1} parent=1 // pred_check
      _
    $region23: #{tpu_custom_call.1} parent=1 // pred_check_branch
      %816 = sbr.rel (0) target = $region25
    $region24: #{tpu_custom_call.1} parent=1 // pred_region
      %818 = vsyncadd [#allocation3], 0
      %s820 = sshll.u32 [#allocation2], 4
      %s821 = int_to_ptr.vmem [resolvable:$true] %s820
      %s822 = sshll.u32 %s5, 4
      %s823 = int_to_ptr.hbm [resolvable:$true] %s822
      %825 = dma.vmem_to_hbm [thread:$0]  %s821, 32, %s823, [#allocation3]
    $region25: #{tpu_custom_call.1} parent=1 // pred_fallthru
      _
    // Predicated region
    $region26: #{tpu_custom_call.1} parent=1 // pred_check
      _
    $region27: #{tpu_custom_call.1} parent=1 // pred_check_branch
      %827 = sbr.rel (0) target = $region29
    $region28: #{tpu_custom_call.1} parent=1 // pred_region
      %829 = dma.done [#allocation3], 32
    $region29: #{tpu_custom_call.1} parent=1 // pred_fallthru
      _
    %830 = vsyncpa [#allocation3], 1

</llo_original>
